<compile_context>
chip_gen: v6e
topology: v6e:2x2x1
jax: 0.10.0
libtpu: 0.0.40
codegen_flags: <defaults>
</compile_context>

<pallas_src>
import math

import jax
import jax.numpy as jnp
from jax.experimental import pallas as pl
from jax.experimental.pallas import tpu as pltpu


# ---- cfg (deterministic, in-script; mirrors the fields the module reads) ----
RECIPROCAL_CURVE_BEGIN_PARAM = 2
ALPHA_RANGE = (0.5, 8.0)
NUM_FILTER_PARAMETERS = 3

_LANE = 128
_SUBLANE = 8

_MAX_TILE_ELEMS = 1 << 20              # ~4 MiB of f32 per tile
_ROW_TILE_CAP = 512
_SMALL_TILE_BYTES = 1 << 20            # below this, ask for triple buffering
_VMEM_LIMIT_BYTES = 32 * 1024 * 1024   # explicit scoped-VMEM limit (v5e default is 16 MiB)


def _round_up(x, m):
    return ((x + m - 1) // m) * m


def _round_down(x, m):
    return (x // m) * m


def _dip_kernel(alpha_ref, img_ref, out_ref):
    """Streaming elementwise reciprocal-curve on a dense (rows, lanes) tile.

    alpha_ref: (rt, 1)   per-row alpha, broadcast over lanes
    img_ref:   (rt, lt)
    out_ref:   (rt, lt)
    """
    a = alpha_ref[...]                     # (rt, 1)
    x = img_ref[...]                       # (rt, lt)
    d = x + a
    r = pl.reciprocal(d, approx=True)      # EUP slot (off the VALU)
    r = r * (2.0 - d * r)                  # one Newton step -> ~full f32 accuracy
    out_ref[...] = (a + 1.0) * x * r


def _pick_tiles(R, HW):
    """Budget-driven tile sizes for the unpadded (R, HW) array."""
    row_tile = min(_round_up(R, _SUBLANE), _ROW_TILE_CAP)
    lane_budget = max(_LANE, _round_down(_MAX_TILE_ELEMS // row_tile, _LANE))
    lane_tile = min(lane_budget, _round_up(HW, _LANE))

    # Make sure the "parallel" grid has >= 2 blocks so both v7x TensorCores
    # get work (irrelevant but harmless on single-TC v5e/v6e).
    if pl.cdiv(R, row_tile) * pl.cdiv(HW, lane_tile) < 2:
        if HW > _LANE:
            lane_tile = max(_LANE, _round_up(pl.cdiv(HW, 2), _LANE))
        elif R > _SUBLANE:
            row_tile = max(_SUBLANE,
                           _round_up(pl.cdiv(_round_up(R, _SUBLANE), 2), _SUBLANE))
    return row_tile, lane_tile


def v60_dip_forward(img, param,
                    *,
                    begin=RECIPROCAL_CURVE_BEGIN_PARAM,
                    alpha_range=ALPHA_RANGE):
    """img: (B, C, H, W) float32 (NCHW, C must equal 3); param: (B, F) float32."""
    B, C, H, W = img.shape
    assert C == NUM_FILTER_PARAMETERS, "reciprocal curve expects 3 channels"
    HW = H * W
    R = B * C

    # --- filter_param_regressor in the wrapper (tiny: 3*B values, XLA fuses) ---
    feats = param[:, begin:begin + NUM_FILTER_PARAMETERS]            # (B, 3)
    log_l = math.log(alpha_range[0])
    log_r = math.log(alpha_range[1])
    log_alpha = (jnp.tanh(feats) * 0.5 + 0.5) * (log_r - log_l) + log_l
    alpha = jnp.exp(log_alpha).astype(img.dtype)                     # (B, 3)
    alpha_rows = alpha.reshape(R, 1)                                 # (B*C, 1)

    # Pad only the tiny per-row alpha (1.0 fill keeps padded rows finite).
    R_pad = _round_up(R, _SUBLANE)
    if R_pad != R:
        alpha_rows = jnp.pad(alpha_rows, ((0, R_pad - R), (0, 0)),
                             constant_values=1.0)

    # Image / output stay UNPADDED: (R, HW), ragged boundary blocks are masked.
    img_flat = img.reshape(R, HW)          # layout-preserving, no HBM copy

    row_tile, lane_tile = _pick_tiles(R, HW)
    grid = (pl.cdiv(R, row_tile), pl.cdiv(HW, lane_tile))
    tile_bytes = row_tile * lane_tile * img.dtype.itemsize

    def _img_spec(triple_buffer):
        idx = lambda i, j: (i, j)
        if triple_buffer:
            try:
                return pl.BlockSpec((row_tile, lane_tile), idx,
                                    pipeline_mode=pl.Buffered(3))
            except (TypeError, AttributeError):
                pass
        return pl.BlockSpec((row_tile, lane_tile), idx)

    def _run(triple_buffer):
        return pl.pallas_call(
            _dip_kernel,
            out_shape=jax.ShapeDtypeStruct((R, HW), img.dtype),
            grid=grid,
            in_specs=[
                pl.BlockSpec((row_tile, 1), lambda i, j: (i, 0)),        # alpha
                _img_spec(triple_buffer),                                # image
            ],
            out_specs=pl.BlockSpec((row_tile, lane_tile), lambda i, j: (i, j)),
            compiler_params=pltpu.CompilerParams(
                dimension_semantics=("parallel", "parallel"),
                vmem_limit_bytes=_VMEM_LIMIT_BYTES),
            cost_estimate=pl.CostEstimate(
                flops=5 * R * HW,
                transcendentals=R * HW,
                bytes_accessed=2 * R * HW * img.dtype.itemsize),
        )(alpha_rows, img_flat)

    if tile_bytes < _SMALL_TILE_BYTES:
        # Small-tile regime: deeper buffering hides DMA issue latency; fall back
        # to the default double-buffer if this jax build rejects pipeline_mode.
        try:
            out_flat = _run(True)
        except Exception:      # genuine errors re-raise identically from _run(False)
            out_flat = _run(False)
    else:
        out_flat = _run(False)

    return out_flat.reshape(B, C, H, W)


def _reference(img, param,
               begin=RECIPROCAL_CURVE_BEGIN_PARAM,
               alpha_range=ALPHA_RANGE):
    feats = param[:, begin:begin + NUM_FILTER_PARAMETERS]
    log_l, log_r = math.log(alpha_range[0]), math.log(alpha_range[1])
    log_alpha = (jnp.tanh(feats) * 0.5 + 0.5) * (log_r - log_l) + log_l
    alpha = jnp.exp(log_alpha)[:, :, None, None]
    return (alpha + 1.0) * img / (img + alpha)


if __name__ == "__main__":
    key = jax.random.PRNGKey(0)
    k_img, k_param = jax.random.split(key)

    B, C, H, W = 2, 3, 16, 16          # C = 3 is required by the 3-param curve filter
    F_DIM = 8                          # total feature vector length; slice [2:5] is used

    img = jax.random.uniform(k_img, (B, C, H, W), dtype=jnp.float32)   # image-like in [0, 1]
    param = jax.random.normal(k_param, (B, F_DIM), dtype=jnp.float32)

    out = v60_dip_forward(img, param)
    out = jax.block_until_ready(out)

    ref = _reference(img, param)
    assert out.shape == (B, C, H, W)
    assert jnp.allclose(out, ref, atol=1e-5, rtol=1e-5), "mismatch vs reference"

    print("KERNEL_OK")
</pallas_src>

<mosaic_0001>
module attributes {stable_mosaic.version = 11 : i64} {
  func.func @_dip_kernel(%arg0: i32, %arg1: i32, %arg2: memref<8x1xf32, #tpu.memory_space<vmem>>, %arg3: memref<8x128xf32, #tpu.memory_space<vmem>>, %arg4: memref<8x128xf32, #tpu.memory_space<vmem>>) attributes {dimension_semantics = [#tpu.dimension_semantics<parallel>, #tpu.dimension_semantics<parallel>], iteration_bounds = array<i64: 1, 2>, scalar_prefetch = 0 : i64, scratch_operands = 0 : i64, tpu.core_type = #tpu.core_type<tc>, window_params = [{transform_indices = @transform_0, window_bounds = array<i64: 8, 1>}, {transform_indices = @transform_1, window_bounds = array<i64: 8, 128>}, {transform_indices = @transform_2, window_bounds = array<i64: 8, 128>}]} {
    %c0 = arith.constant 0 : index
    %c0_0 = arith.constant 0 : index
    %0 = vector.load %arg2[%c0, %c0_0] : memref<8x1xf32, #tpu.memory_space<vmem>>, vector<8x1xf32>
    %c0_1 = arith.constant 0 : index
    %c0_2 = arith.constant 0 : index
    %1 = vector.load %arg3[%c0_1, %c0_2] : memref<8x128xf32, #tpu.memory_space<vmem>>, vector<8x128xf32>
    %2 = vector.broadcast %0 : vector<8x1xf32> to vector<8x128xf32>
    %3 = arith.addf %1, %2 : vector<8x128xf32>
    %4 = tpu.reciprocal %3 {approx = true} : vector<8x128xf32> -> vector<8x128xf32>
    %5 = arith.mulf %3, %4 : vector<8x128xf32>
    %cst = arith.constant 2.000000e+00 : f32
    %6 = vector.broadcast %cst : f32 to vector<8x128xf32>
    %7 = arith.subf %6, %5 : vector<8x128xf32>
    %8 = arith.mulf %4, %7 : vector<8x128xf32>
    %cst_3 = arith.constant 1.000000e+00 : f32
    %9 = vector.broadcast %cst_3 : f32 to vector<8x1xf32>
    %10 = arith.addf %0, %9 : vector<8x1xf32>
    %11 = vector.broadcast %10 : vector<8x1xf32> to vector<8x128xf32>
    %12 = arith.mulf %11, %1 : vector<8x128xf32>
    %13 = arith.mulf %12, %8 : vector<8x128xf32>
    %c0_4 = arith.constant 0 : index
    %c0_5 = arith.constant 0 : index
    %14 = vector.load %arg4[%c0_4, %c0_5] : memref<8x128xf32, #tpu.memory_space<vmem>>, vector<8x128xf32>
    tpu.vector_store %arg4[%c0_4, %c0_5], %13 {strides = array<i32>} : memref<8x128xf32, #tpu.memory_space<vmem>>, vector<8x128xf32>,
    return
  }
  func.func @transform_0(%arg0: i32, %arg1: i32) -> (i32, i32) {
    %c0_i32 = arith.constant 0 : i32
    %c0_i32_0 = arith.constant 0 : i32
    return %arg0, %c0_i32 : i32, i32
  }
  func.func @transform_1(%arg0: i32, %arg1: i32) -> (i32, i32) {
    %c0_i32 = arith.constant 0 : i32
    return %arg0, %arg1 : i32, i32
  }
  func.func @transform_2(%arg0: i32, %arg1: i32) -> (i32, i32) {
    %c0_i32 = arith.constant 0 : i32
    return %arg0, %arg1 : i32, i32
  }
}

</mosaic_0001>

<llo_original>
// kernel: tpu_custom_call.1
$region0: #{tpu_custom_call.1}
  #allocation0 [shape = 'u32[]', space=smem, size = 0x4, offset = 0x4, fixed_abs, tag = 'smem constant byte address 0x4 - core index']
  #allocation1 [shape = 'u32[144,128]{1,0:T(1,128)}', space=vmem, size = 0x12000, scoped, tag = 'internal scratch']
  %s0 = inlined_call_operand.vmem [shape: f32[8,1], index: 0, kind: input, shape index: {}]
  %s1 = inlined_call_operand.hbm [shape: f32[6,256], index: 1, kind: input, shape index: {}]
  %s2 = inlined_call_operand.hbm [shape: f32[6,256], index: 2, kind: output, shape index: {}]
  %s3 = sld [smem:[#allocation0]]
  $region45: #{tpu_custom_call.1} parent=0
    _
  %s5 = ssub.s32 1, %s3
  %s6 = scalar_select 0, %s5, %s3
  $region1: #{tpu_custom_call.1} parent=0
    #allocation2 [shape = 'u8[8192]{0}', space=vmem, size = 0x2000, scoped, tag = 'input window, operand 1']
    #allocation3 [shape = 's32[2]{0}', space=sflag, size = 0x8, scoped, tag = 'scoped memory for tpu_custom_call.1']
    #allocation4 [shape = 's32[2]{0}', space=sflag, size = 0x8, scoped, tag = 'scoped memory for tpu_custom_call.1']
    #allocation5 [shape = 'u8[8192]{0}', space=vmem, size = 0x2000, scoped, tag = 'output window, operand 0']
    %7 = vsyncpa [#allocation3], 0
    %s8 = scalar_lea.sflag [#allocation3], 1
    %9 = vsyncpa %s8, 0
    %10 = vsyncpa [#allocation4], 0
    %s11 = scalar_lea.sflag [#allocation4], 1
    %12 = vsyncpa %s11, 0
    loop: start=0, step=1, limit=4
    $region2: #{tpu_custom_call.1} parent=1 // loop_pre_header
      _
    $region3: #{tpu_custom_call.1} parent=1 // loop_header
      %s14 = sphi 0, %s18
      %p15 = scmp.ge.s32.totalorder %s14, 4
      %s21 = sphi 0, %s33
      %s22 = sphi 0, %s29
      %s23 = sphi 0, %s21
      %s24 = sphi 0, %s22
      %s25 = sphi 0, %s23
      %s26 = sphi 0, %s24
      %s36 = sphi 0, %s38
      %s39 = sphi 0, %s36
      %s40 = sphi 0, %s39
      %s56 = sphi 0, %s40
      %s64 = sphi 0, %s66
      %s67 = sphi 0, %s64
      %s68 = sphi 0, %s67
      %s84 = sphi 0, %s68
      %s92 = sphi 0, %s94
      %s95 = sphi 0, %s92
      %s96 = sphi 0, %s95
      %s112 = sphi 0, %s96
    $region4: #{tpu_custom_call.1} parent=1 // loop_header_branch
      %17 = sbr.rel (%p15) target = $region8
    $region5: #{tpu_custom_call.1} parent=1 // loop_body
      %s19 = ssub.s32 %s14, 1
      %s20 = ssub.s32 %s14, 2
      %s27 = sadd.s32 1, %s22
      %p28 = scmp.ge.s32.totalorder %s27, 2
      %s29 = scalar_select %p28, 0, %s27
      %s30 = sadd.s32 1, %s21
      %s31 = scalar_select %p28, %s30, %s21
      %p32 = scmp.ge.s32.totalorder %s31, 1
      %s33 = scalar_select %p32, 0, %s31
      %s34 = ssub.s32 %s21, %s33
      %p35 = scmp.eq.s32.totalorder %s34, 0
      %s37 = sadd.s32 %s36, 1
      %s38 = scalar_select %p35, %s36, %s37
      %p41 = pneg %p35
      %p42 = scmp.eq.s32.totalorder %s14, 1
      %p43 = por %p41, %p42
      %p44 = scmp.ne.s32.totalorder %s36, %s39
      %p45 = scmp.eq.s32.totalorder %s14, 0
      %p46 = por %p44, %p45
      %p47 = scmp.ne.s32.totalorder %s36, %s39
      %p48 = scmp.eq.s32.totalorder %s19, 1
      %p49 = por %p47, %p48
      %p50 = scmp.ne.s32.totalorder %s39, %s40
      %p51 = scmp.eq.s32.totalorder %s19, 0
      %p52 = por %p50, %p51
      %p53 = scmp.ne.s32.totalorder %s39, %s40
      %p54 = scmp.eq.s32.totalorder %s20, 1
      %p55 = por %p53, %p54
      %p57 = scmp.ne.s32.totalorder %s40, %s56
      %p58 = scmp.eq.s32.totalorder %s20, 0
      %p59 = por %p57, %p58
      %s60 = ssub.s32 %s21, %s33
      %s61 = ssub.s32 %s22, %s29
      %s62 = sor.u32 %s60, %s61
      %p63 = scmp.eq.s32.totalorder %s62, 0
      %s65 = sadd.s32 %s64, 1
      %s66 = scalar_select %p63, %s64, %s65
      %p69 = pneg %p63
      %p70 = scmp.eq.s32.totalorder %s14, 1
      %p71 = por %p69, %p70
      %p72 = scmp.ne.s32.totalorder %s64, %s67
      %p73 = scmp.eq.s32.totalorder %s14, 0
      %p74 = por %p72, %p73
      %p75 = scmp.ne.s32.totalorder %s64, %s67
      %p76 = scmp.eq.s32.totalorder %s19, 1
      %p77 = por %p75, %p76
      %p78 = scmp.ne.s32.totalorder %s67, %s68
      %p79 = scmp.eq.s32.totalorder %s19, 0
      %p80 = por %p78, %p79
      %p81 = scmp.ne.s32.totalorder %s67, %s68
      %p82 = scmp.eq.s32.totalorder %s20, 1
      %p83 = por %p81, %p82
      %p85 = scmp.ne.s32.totalorder %s68, %s84
      %p86 = scmp.eq.s32.totalorder %s20, 0
      %p87 = por %p85, %p86
      %s88 = ssub.s32 %s21, %s33
      %s89 = ssub.s32 %s22, %s29
      %s90 = sor.u32 %s88, %s89
      %p91 = scmp.eq.s32.totalorder %s90, 0
      %s93 = sadd.s32 %s92, 1
      %s94 = scalar_select %p91, %s92, %s93
      %p97 = pneg %p91
      %p98 = scmp.eq.s32.totalorder %s14, 1
      %p99 = por %p97, %p98
      %p100 = scmp.ne.s32.totalorder %s92, %s95
      %p101 = scmp.eq.s32.totalorder %s14, 0
      %p102 = por %p100, %p101
      %p103 = scmp.ne.s32.totalorder %s92, %s95
      %p104 = scmp.eq.s32.totalorder %s19, 1
      %p105 = por %p103, %p104
      %p106 = scmp.ne.s32.totalorder %s95, %s96
      %p107 = scmp.eq.s32.totalorder %s19, 0
      %p108 = por %p106, %p107
      %p109 = scmp.ne.s32.totalorder %s95, %s96
      %p110 = scmp.eq.s32.totalorder %s20, 1
      %p111 = por %p109, %p110
      %p113 = scmp.ne.s32.totalorder %s96, %s112
      %p114 = scmp.eq.s32.totalorder %s20, 0
      %p115 = por %p113, %p114
      %p116 = scmp.le.s32.totalorder 1, %s14
      %p117 = scmp.lt.s32.totalorder %s14, 3
      %p118 = pnand %p116, %p117
      %p119 = pneg %p118
      // Predicated region
      $region9: #{tpu_custom_call.1} parent=5 // pred_check
        _
      $region10: #{tpu_custom_call.1} parent=5 // pred_check_branch
        %121 = sbr.rel (%p118) target = $region12
      $region11: #{tpu_custom_call.1} parent=5 // pred_region
        %s122 = ssub.s32 %s14, 1
        // Predicated region
        $region13: #{tpu_custom_call.1} parent=11 // pred_check
          %p123 = pneg %p52
        $region14: #{tpu_custom_call.1} parent=11 // pred_check_branch
          %125 = sbr.rel (%p123) target = $region16
        $region15: #{tpu_custom_call.1} parent=11 // pred_region
          %p126 = scmp.lt.s32.totalorder %s23, 0
          %s127 = scalar_select %p126, %s23, 0
          %s128 = smul.addr %s127, 8
          %s129 = scalar_lea.vmem %s0, %s128
        $region16: #{tpu_custom_call.1} parent=11 // pred_fallthru
          _
      $region12: #{tpu_custom_call.1} parent=5 // pred_fallthru
        _
      %p130 = scmp.lt.s32.totalorder %s14, 2
      // Predicated region
      $region17: #{tpu_custom_call.1} parent=5 // pred_check
        %p131 = pneg %p130
      $region18: #{tpu_custom_call.1} parent=5 // pred_check_branch
        %133 = sbr.rel (%p131) target = $region20
      $region19: #{tpu_custom_call.1} parent=5 // pred_region
        // Predicated region
        $region21: #{tpu_custom_call.1} parent=19 // pred_check
          %p134 = pneg %p74
        $region22: #{tpu_custom_call.1} parent=19 // pred_check_branch
          %136 = sbr.rel (%p134) target = $region24
        $region23: #{tpu_custom_call.1} parent=19 // pred_region
          %s137 = sand.u32 %s64, 1
          %s138 = scalar_lea.sflag [#allocation3], %s137
          %s139 = sand.u32 %s64, 1
          %s140 = smul.addr %s139, 8
          %s141 = scalar_lea.vmem [#allocation2], %s140
          %s143 = ssub.s32 128, 128
          %144 = vsyncadd %s138, %s143
          %s145 = smul.addr %s21, 2
          %s146 = sadd.s32 %s22, %s145
          %s147 = smul.addr %s146, 128
          %s148 = scalar_lea.hbm %s1, %s147
          %s150 = sshll.u32 %s141, 4
          %s151 = int_to_ptr.vmem [resolvable:$true] %s150
          %153 = dma.hbm_to_vmem [thread:$0]  %s148, 128, %s151, %s138
        $region24: #{tpu_custom_call.1} parent=19 // pred_fallthru
          _
      $region20: #{tpu_custom_call.1} parent=5 // pred_fallthru
        _
      %p154 = scmp.le.s32.totalorder 1, %s14
      %p155 = scmp.lt.s32.totalorder %s14, 3
      %p156 = pnand %p154, %p155
      %p157 = pneg %p156
      // Predicated region
      $region25: #{tpu_custom_call.1} parent=5 // pred_check
        _
      $region26: #{tpu_custom_call.1} parent=5 // pred_check_branch
        %159 = sbr.rel (%p156) target = $region28
      $region27: #{tpu_custom_call.1} parent=5 // pred_region
        %s160 = ssub.s32 %s14, 1
        %s161 = sand.u32 %s67, 1
        %s162 = scalar_lea.sflag [#allocation3], %s161
        %s163 = sand.u32 %s67, 1
        %s164 = smul.addr %s163, 8
        %s165 = scalar_lea.vmem [#allocation2], %s164
        // Predicated region
        $region29: #{tpu_custom_call.1} parent=27 // pred_check
          %p166 = pneg %p80
        $region30: #{tpu_custom_call.1} parent=27 // pred_check_branch
          %168 = sbr.rel (%p166) target = $region32
        $region31: #{tpu_custom_call.1} parent=27 // pred_region
          %169 = dma.done %s162, 128
        $region32: #{tpu_custom_call.1} parent=27 // pred_fallthru
          _
        %p170 = scmp.lt.s32.totalorder %s23, 0
        %s171 = scalar_select %p170, %s23, 0
        %s172 = smul.addr %s171, 8
        %s173 = scalar_lea.vmem %s0, %s172
        %p174 = pneg %p52
        %p175 = pneg %p49
        %s176 = sand.u32 %s67, 1
        %s177 = scalar_lea.sflag [#allocation3], %s176
        %s178 = sand.u32 %s67, 1
        %s179 = smul.addr %s178, 8
        %s180 = scalar_lea.vmem [#allocation2], %s179
        %p181 = pneg %p80
        %p182 = pneg %p77
        %p183 = pneg %p108
        %p184 = pneg %p105
        %s185 = sand.u32 %s95, 1
        %s186 = scalar_lea.sflag [#allocation4], %s185
        %s187 = sand.u32 %s95, 1
        %s188 = smul.addr %s187, 8
        %s189 = scalar_lea.vmem [#allocation5], %s188
        %p190 = scmp.lt.s32.totalorder %s23, 0
        %s191 = scalar_select %p190, %s23, 0
        %s192 = smul.addr %s191, 8
        %s193 = scalar_lea.vmem %s0, %s192
        %v194 = vld [vmem:[%s193] sm:$0xff]
        %v195 = vld [vmem:[%s165] sm:$0xff]
        %197 = vset.pattern.permute.xlu0 0
        %198 = vperm.xlu0 %197, %v194
        %v199 = vpop.permute.xlu0 %198
        %v201 = vadd.f32 %v195, %v199
        %v202 = vrcp.pop %v201
        %v203 = vmul.f32 %v201, %v202
        %v204 = vsub.f32 2.0, %v203
        %v205 = vmul.f32 %v202, %v204
        %v206 = vadd.f32 %v194, 1.0
        %208 = vset.pattern.permute.xlu0 0
        %209 = vperm.xlu0 %208, %v206
        %v210 = vpop.permute.xlu0 %209
        %v212 = vmul.f32 %v210, %v195
        %v213 = vmul.f32 %v212, %v205
        %214 = vst [vmem:[%s189] sm:$0xff] %v213
        %s215 = sand.u32 %s95, 1
        %s216 = scalar_lea.sflag [#allocation4], %s215
        %s217 = sand.u32 %s95, 1
        %s218 = smul.addr %s217, 8
        %s219 = scalar_lea.vmem [#allocation5], %s218
        // Predicated region
        $region33: #{tpu_custom_call.1} parent=27 // pred_check
          %p220 = pneg %p105
        $region34: #{tpu_custom_call.1} parent=27 // pred_check_branch
          %222 = sbr.rel (%p220) target = $region36
        $region35: #{tpu_custom_call.1} parent=27 // pred_region
          %s224 = ssub.s32 128, 128
          %225 = vsyncadd %s216, %s224
          %s226 = smul.addr %s23, 2
          %s227 = sadd.s32 %s24, %s226
          %s228 = smul.addr %s227, 128
          %s229 = scalar_lea.hbm %s2, %s228
          %s231 = sshll.u32 %s219, 4
          %s232 = int_to_ptr.vmem [resolvable:$true] %s231
          %234 = dma.vmem_to_hbm [thread:$0]  %s232, 128, %s229, %s216
        $region36: #{tpu_custom_call.1} parent=27 // pred_fallthru
          _
      $region28: #{tpu_custom_call.1} parent=5 // pred_fallthru
        _
      %p235 = scmp.le.s32.totalorder 2, %s14
      // Predicated region
      $region37: #{tpu_custom_call.1} parent=5 // pred_check
        %p236 = pneg %p235
      $region38: #{tpu_custom_call.1} parent=5 // pred_check_branch
        %238 = sbr.rel (%p236) target = $region40
      $region39: #{tpu_custom_call.1} parent=5 // pred_region
        %s239 = ssub.s32 %s14, 2
        // Predicated region
        $region41: #{tpu_custom_call.1} parent=39 // pred_check
          %p240 = pneg %p111
        $region42: #{tpu_custom_call.1} parent=39 // pred_check_branch
          %242 = sbr.rel (%p240) target = $region44
        $region43: #{tpu_custom_call.1} parent=39 // pred_region
          %s243 = sand.u32 %s96, 1
          %s244 = scalar_lea.sflag [#allocation4], %s243
          %s245 = sand.u32 %s96, 1
          %s246 = smul.addr %s245, 8
          %s247 = scalar_lea.vmem [#allocation5], %s246
          %248 = dma.done %s244, 128
        $region44: #{tpu_custom_call.1} parent=39 // pred_fallthru
          _
      $region40: #{tpu_custom_call.1} parent=5 // pred_fallthru
        _
    $region6: #{tpu_custom_call.1} parent=1 // loop_footer
      %s18 = sadd.s32 1, %s14
    $region7: #{tpu_custom_call.1} parent=1 // loop_footer_branch
      %13 = sbr.rel target = $region3
    $region8: #{tpu_custom_call.1} parent=1 // loop_exit
      _
    %249 = vsyncpa [#allocation3], 1
    %s250 = scalar_lea.sflag [#allocation3], 1
    %251 = vsyncpa %s250, 1
    %252 = vsyncpa [#allocation4], 1
    %s253 = scalar_lea.sflag [#allocation4], 1
    %254 = vsyncpa %s253, 1

</llo_original>
